<compile_context>
chip_gen: v6e
topology: v6e:2x2x1
jax: 0.10.0
libtpu: 0.0.40
codegen_flags: <defaults>
</compile_context>

<pallas_src>
import functools
import math

import jax
import jax.numpy as jnp
from jax.experimental import pallas as pl
from jax.experimental.pallas import tpu as pltpu


def _spiral_enblock_kernel(patches_ref, w_ref, b_ref, t_ref, o_ref, *, n_nodes, bt):
    # patches_ref: (Bt*N, SC)   spiral-gathered features (compute dtype)
    # w_ref:       (SC, Cp)     SpiralConv weight^T, zero-padded to lane-dense Cp
    # b_ref:       (1, Cp)      linear bias (f32, zero-padded)
    # t_ref:       (D, N)       densified down_transform (f32)
    # o_ref:       (Bt, D, Cp)  pooled output block (lane-dense)

    # ---- SpiralConv Linear: one big MXU matmul over the whole batch block ----
    y = jnp.dot(patches_ref[...], w_ref[...],
                preferred_element_type=jnp.float32) + b_ref[...]        # (Bt*N, Cp) f32

    # ---- ELU (alpha=1), f32 VPU/EUP path (v5e has no bf16 vector units) ----
    # exp(min(y,0)) - 1: one EUP exp + select; abs error vs expm1 <= f32 eps.
    act = jnp.where(y > 0.0, y, jnp.exp(jnp.minimum(y, 0.0)) - 1.0)     # (Bt*N, Cp) f32

    # ---- Pool: sparse scatter-add == dense T @ act, per sample (f32 for parity) ----
    t = t_ref[...]                                                      # (D, N) f32
    for i in range(bt):                                                 # static unroll
        a_i = act[i * n_nodes:(i + 1) * n_nodes, :]                     # (N, Cp) f32
        o_ref[i] = jnp.dot(t, a_i,
                           preferred_element_type=jnp.float32).astype(o_ref.dtype)


def spiral_enblock(x, indices, weight, bias, down_transform, *,
                   compute_dtype=jnp.bfloat16, block_batch=8):
    """x: (bs, V, C_in); indices: (N, S) int32; weight: (C_out, C_in*S);
    bias: (C_out,); down_transform: dense (D, N).  Returns (bs, D, C_out)."""
    assert x.ndim == 3, "batched (bs, n_vertices, in_channels) input expected"
    bs, V, C_in = x.shape
    N, S = indices.shape
    C_out, in_feat = weight.shape
    assert in_feat == C_in * S
    D, N_t = down_transform.shape
    assert N_t == N
    SC = C_in * S

    # Lane-dense output channels: pad C_out up to a multiple of 128 (>= 128).
    Cp = max(128, ((C_out + 127) // 128) * 128)

    # Bt samples per grid step; pad the batch to a multiple of Bt if needed.
    Bt = max(1, min(block_batch, bs))
    bs_p = pl.cdiv(bs, Bt) * Bt

    # ---- glue: spiral gather (channels-last), matches torch.index_select + view ----
    patches = jnp.take(x, indices.reshape(-1), axis=1).reshape(bs, N, SC)
    if bs_p != bs:
        patches = jnp.pad(patches, ((0, bs_p - bs), (0, 0), (0, 0)))
    # Flatten (batch, node) so the kernel's Linear is one 2D MXU matmul per step.
    patches2d = patches.reshape(bs_p * N, SC).astype(compute_dtype)

    # Zero-padded, lane-dense weight/bias; f32 down_transform for pooling parity.
    w_t = jnp.zeros((SC, Cp), compute_dtype).at[:, :C_out].set(
        weight.T.astype(compute_dtype))
    b2d = jnp.zeros((1, Cp), jnp.float32).at[:, :C_out].set(
        bias.astype(jnp.float32))
    t2d = down_transform.astype(jnp.float32)

    out_dtype = x.dtype
    isz = jnp.dtype(compute_dtype).itemsize
    osz = jnp.dtype(out_dtype).itemsize
    # VMEM budget from actual tile bytes (double-buffered blocks + f32 temporaries).
    tile_bytes = (2 * (Bt * N * SC) * isz          # patches block (double-buffered)
                  + 2 * (Bt * D * Cp) * osz        # output block  (double-buffered)
                  + 2 * (SC * Cp) * isz            # weight (grid-invariant, 2 bufs)
                  + 2 * Cp * 4                     # bias
                  + 2 * D * N * 4                  # down_transform
                  + 4 * (Bt * N * Cp) * 4)         # y / act f32 temporaries + slack
    vmem_limit = int(min(100 * 2**20, max(2 * tile_bytes, 8 * 2**20)))

    kernel = functools.partial(_spiral_enblock_kernel, n_nodes=N, bt=Bt)

    out = pl.pallas_call(
        kernel,
        out_shape=jax.ShapeDtypeStruct((bs_p, D, Cp), out_dtype),
        grid_spec=pltpu.PrefetchScalarGridSpec(
            num_scalar_prefetch=0,
            grid=(bs_p // Bt,),
            in_specs=[
                pl.BlockSpec((Bt * N, SC), lambda b: (b, 0)),   # batched patches block
                pl.BlockSpec((SC, Cp), lambda b: (0, 0)),       # weight (grid-invariant)
                pl.BlockSpec((1, Cp), lambda b: (0, 0)),        # bias
                pl.BlockSpec((D, N), lambda b: (0, 0)),         # down_transform
            ],
            out_specs=pl.BlockSpec((Bt, D, Cp), lambda b: (b, 0, 0)),
        ),
        compiler_params=pltpu.CompilerParams(
            dimension_semantics=("parallel",),
            vmem_limit_bytes=vmem_limit,
        ),
    )(patches2d, w_t, b2d, t2d)

    return out[:bs, :, :C_out]


def _reference(x, indices, weight, bias, rows, cols, vals, n_down):
    """Pure-JAX f32 reference mirroring the PyTorch forward (incl. sparse Pool)."""
    bs, V, C_in = x.shape
    N, S = indices.shape
    xg = jnp.take(x, indices.reshape(-1), axis=1).reshape(bs, N, S * C_in)
    y = xg @ weight.T + bias[None, None, :]
    act = jnp.where(y > 0.0, y, jnp.expm1(y))                 # F.elu, alpha=1
    # Pool: index_select along dim 1 by cols, * value, scatter_add by rows.
    sel = jnp.take(act, cols, axis=1) * vals[None, :, None]
    out = jnp.zeros((bs, n_down, weight.shape[0]), act.dtype)
    return out.at[:, rows, :].add(sel)


if __name__ == "__main__":
    # Small shapes consistent with SpiralEnblock: bs=2 meshes, 64 vertices,
    # spiral length 9, 16 -> 32 channels, down-sample 64 -> 32 nodes.
    bs, V, C_in = 2, 64, 16
    S, C_out = 9, 32
    D = 32
    nnz_per_row = 3

    key = jax.random.PRNGKey(0)
    kx, kw, kb, ki, kc, kv = jax.random.split(key, 6)
    x = jax.random.normal(kx, (bs, V, C_in), dtype=jnp.float32)
    weight = 0.1 * jax.random.normal(kw, (C_out, C_in * S), dtype=jnp.float32)
    bias = 0.1 * jax.random.normal(kb, (C_out,), dtype=jnp.float32)
    indices = jax.random.randint(ki, (V, S), 0, V, dtype=jnp.int32)

    # Sparse down_transform in COO form (mirrors the PyTorch sparse tensor),
    # densified once for the kernel.
    rows = jnp.repeat(jnp.arange(D, dtype=jnp.int32), nnz_per_row)
    cols = jax.random.randint(kc, (D * nnz_per_row,), 0, V, dtype=jnp.int32)
    vals = jax.random.uniform(kv, (D * nnz_per_row,), dtype=jnp.float32)
    dense_T = jnp.zeros((D, V), jnp.float32).at[rows, cols].add(vals)

    ref = _reference(x, indices, weight, bias, rows, cols, vals, D)

    # 1) f32 compute path: tight correctness check vs the PyTorch-equivalent reference.
    out_f32 = jax.block_until_ready(
        spiral_enblock(x, indices, weight, bias, dense_T, compute_dtype=jnp.float32))
    assert out_f32.shape == (bs, D, C_out)
    assert jnp.allclose(out_f32, ref, atol=1e-4, rtol=1e-4), "f32 mismatch vs reference"

    # 2) default bf16-MXU path: fast path, tolerance reflects bf16 operand rounding.
    out_bf16 = jax.block_until_ready(
        spiral_enblock(x, indices, weight, bias, dense_T))
    assert out_bf16.shape == (bs, D, C_out)
    assert jnp.allclose(out_bf16, ref, atol=1e-1, rtol=1e-1), "bf16 mismatch vs reference"

    print("KERNEL_OK")
</pallas_src>

<mosaic_0001>
module attributes {stable_mosaic.version = 11 : i64} {
  func.func @_spiral_enblock_kernel(%arg0: i32, %arg1: memref<128x144xf32, #tpu.memory_space<vmem>>, %arg2: memref<144x128xf32, #tpu.memory_space<vmem>>, %arg3: memref<1x128xf32, #tpu.memory_space<vmem>>, %arg4: memref<32x64xf32, #tpu.memory_space<vmem>>, %arg5: memref<2x32x128xf32, #tpu.memory_space<vmem>>) attributes {dimension_semantics = [#tpu.dimension_semantics<parallel>], iteration_bounds = array<i64: 1>, scalar_prefetch = 0 : i64, scratch_operands = 0 : i64, tpu.core_type = #tpu.core_type<tc>, window_params = [{transform_indices = @transform_0, window_bounds = array<i64: 128, 144>}, {pipeline_mode = #tpu.pipeline_mode<synchronous>, transform_indices = @transform_1, window_bounds = array<i64: 144, 128>}, {pipeline_mode = #tpu.pipeline_mode<synchronous>, transform_indices = @transform_2, window_bounds = array<i64: 1, 128>}, {pipeline_mode = #tpu.pipeline_mode<synchronous>, transform_indices = @transform_3, window_bounds = array<i64: 32, 64>}, {transform_indices = @transform_4, window_bounds = array<i64: 2, 32, 128>}]} {
    %c0 = arith.constant 0 : index
    %c0_0 = arith.constant 0 : index
    %0 = vector.load %arg1[%c0, %c0_0] : memref<128x144xf32, #tpu.memory_space<vmem>>, vector<128x144xf32>
    %c0_1 = arith.constant 0 : index
    %c0_2 = arith.constant 0 : index
    %1 = vector.load %arg2[%c0_1, %c0_2] : memref<144x128xf32, #tpu.memory_space<vmem>>, vector<144x128xf32>
    %cst = arith.constant dense<0.000000e+00> : vector<128x128xf32>
    %2 = tpu.matmul %0, %1, %cst {dimension_numbers = #tpu.dot_dimension_numbers<[1], [0], [0], [1], [0, 0, 1, 1], [], []>} : vector<128x144xf32>, vector<144x128xf32>, vector<128x128xf32> -> vector<128x128xf32>
    %c0_3 = arith.constant 0 : index
    %c0_4 = arith.constant 0 : index
    %3 = vector.load %arg3[%c0_3, %c0_4] : memref<1x128xf32, #tpu.memory_space<vmem>>, vector<1x128xf32>
    %4 = vector.broadcast %3 : vector<1x128xf32> to vector<128x128xf32>
    %5 = arith.addf %2, %4 : vector<128x128xf32>
    %cst_5 = arith.constant 0.000000e+00 : f32
    %6 = vector.broadcast %cst_5 : f32 to vector<128x128xf32>
    %7 = arith.cmpf ogt, %5, %6 : vector<128x128xf32>
    %cst_6 = arith.constant 0.000000e+00 : f32
    %8 = vector.broadcast %cst_6 : f32 to vector<128x128xf32>
    %9 = arith.minimumf %5, %8 : vector<128x128xf32>
    %10 = math.exp %9 : vector<128x128xf32>
    %cst_7 = arith.constant 1.000000e+00 : f32
    %11 = vector.broadcast %cst_7 : f32 to vector<128x128xf32>
    %12 = arith.subf %10, %11 : vector<128x128xf32>
    %13 = arith.select %7, %5, %12 : vector<128x128xi1>, vector<128x128xf32>
    %c0_8 = arith.constant 0 : index
    %c0_9 = arith.constant 0 : index
    %14 = vector.load %arg4[%c0_8, %c0_9] : memref<32x64xf32, #tpu.memory_space<vmem>>, vector<32x64xf32>
    %15 = vector.extract_strided_slice %13 {offsets = [0, 0], sizes = [64, 128], strides = [1, 1]} : vector<128x128xf32> to vector<64x128xf32>
    %cst_10 = arith.constant dense<0.000000e+00> : vector<32x128xf32>
    %16 = tpu.matmul %14, %15, %cst_10 {dimension_numbers = #tpu.dot_dimension_numbers<[1], [0], [0], [1], [0, 0, 1, 1], [], []>} : vector<32x64xf32>, vector<64x128xf32>, vector<32x128xf32> -> vector<32x128xf32>
    %c0_11 = arith.constant 0 : index
    %c0_12 = arith.constant 0 : index
    %c0_13 = arith.constant 0 : index
    %17 = vector.load %arg5[%c0_11, %c0_12, %c0_13] : memref<2x32x128xf32, #tpu.memory_space<vmem>>, vector<1x32x128xf32>
    %18 = vector.shape_cast %17 : vector<1x32x128xf32> to vector<32x128xf32>
    %19 = vector.shape_cast %16 : vector<32x128xf32> to vector<1x32x128xf32>
    tpu.vector_store %arg5[%c0_11, %c0_12, %c0_13], %19 {strides = array<i32>} : memref<2x32x128xf32, #tpu.memory_space<vmem>>, vector<1x32x128xf32>,
    %20 = vector.extract_strided_slice %13 {offsets = [64, 0], sizes = [64, 128], strides = [1, 1]} : vector<128x128xf32> to vector<64x128xf32>
    %cst_14 = arith.constant dense<0.000000e+00> : vector<32x128xf32>
    %21 = tpu.matmul %14, %20, %cst_14 {dimension_numbers = #tpu.dot_dimension_numbers<[1], [0], [0], [1], [0, 0, 1, 1], [], []>} : vector<32x64xf32>, vector<64x128xf32>, vector<32x128xf32> -> vector<32x128xf32>
    %c1 = arith.constant 1 : index
    %c0_15 = arith.constant 0 : index
    %c0_16 = arith.constant 0 : index
    %22 = vector.load %arg5[%c1, %c0_15, %c0_16] : memref<2x32x128xf32, #tpu.memory_space<vmem>>, vector<1x32x128xf32>
    %23 = vector.shape_cast %22 : vector<1x32x128xf32> to vector<32x128xf32>
    %24 = vector.shape_cast %21 : vector<32x128xf32> to vector<1x32x128xf32>
    tpu.vector_store %arg5[%c1, %c0_15, %c0_16], %24 {strides = array<i32>} : memref<2x32x128xf32, #tpu.memory_space<vmem>>, vector<1x32x128xf32>,
    return
  }
  func.func @transform_0(%arg0: i32) -> (i32, i32) {
    %c0_i32 = arith.constant 0 : i32
    %c0_i32_0 = arith.constant 0 : i32
    return %arg0, %c0_i32 : i32, i32
  }
  func.func @transform_1(%arg0: i32) -> (i32, i32) {
    %c0_i32 = arith.constant 0 : i32
    %c0_i32_0 = arith.constant 0 : i32
    %c0_i32_1 = arith.constant 0 : i32
    return %c0_i32, %c0_i32_0 : i32, i32
  }
  func.func @transform_2(%arg0: i32) -> (i32, i32) {
    %c0_i32 = arith.constant 0 : i32
    %c0_i32_0 = arith.constant 0 : i32
    %c0_i32_1 = arith.constant 0 : i32
    return %c0_i32, %c0_i32_0 : i32, i32
  }
  func.func @transform_3(%arg0: i32) -> (i32, i32) {
    %c0_i32 = arith.constant 0 : i32
    %c0_i32_0 = arith.constant 0 : i32
    %c0_i32_1 = arith.constant 0 : i32
    return %c0_i32, %c0_i32_0 : i32, i32
  }
  func.func @transform_4(%arg0: i32) -> (i32, i32, i32) {
    %c0_i32 = arith.constant 0 : i32
    %c0_i32_0 = arith.constant 0 : i32
    %c0_i32_1 = arith.constant 0 : i32
    return %arg0, %c0_i32, %c0_i32_0 : i32, i32, i32
  }
}

</mosaic_0001>

<llo_original>
// kernel: tpu_custom_call.1
$region0: #{tpu_custom_call.1}
  #allocation0 [shape = 'u32[]', space=smem, size = 0x4, offset = 0x4, fixed_abs, tag = 'smem constant byte address 0x4 - core index']
  #allocation1 [shape = 'u32[144,128]{1,0:T(1,128)}', space=vmem, size = 0x12000, scoped, tag = 'internal scratch']
  %s0 = inlined_call_operand.vmem [shape: f32[128,144], index: 0, kind: input, shape index: {}]
  %s1 = inlined_call_operand.vmem [shape: f32[144,128], index: 1, kind: input, shape index: {}]
  %s2 = inlined_call_operand.vmem [shape: f32[1,128], index: 2, kind: input, shape index: {}]
  %s3 = inlined_call_operand.vmem [shape: f32[32,64], index: 3, kind: input, shape index: {}]
  %s4 = inlined_call_operand.hbm [shape: f32[2,32,128], index: 4, kind: output, shape index: {}]
  %s5 = sld [smem:[#allocation0]]
  $region26: #{tpu_custom_call.1} parent=0
    _
  %s7 = ssub.s32 1, %s5
  %s8 = scalar_select 0, %s7, %s5
  $region1: #{tpu_custom_call.1} parent=0
    #allocation2 [shape = 'u8[32768]{0}', space=vmem, size = 0x8000, scoped, tag = 'output window, operand 0, single buffered']
    #allocation3 [shape = 's32[1]{0}', space=sflag, size = 0x4, scoped, tag = 'scoped memory for tpu_custom_call.1']
    %9 = vsyncpa [#allocation3], 0
    // Predicated region
    $region2: #{tpu_custom_call.1} parent=1 // pred_check
      _
    $region3: #{tpu_custom_call.1} parent=1 // pred_check_branch
      %11 = sbr.rel (0) target = $region5
    $region4: #{tpu_custom_call.1} parent=1 // pred_region
      _
    $region5: #{tpu_custom_call.1} parent=1 // pred_fallthru
      _
    // Predicated region
    $region6: #{tpu_custom_call.1} parent=1 // pred_check
      _
    $region7: #{tpu_custom_call.1} parent=1 // pred_check_branch
      %13 = sbr.rel (0) target = $region9
    $region8: #{tpu_custom_call.1} parent=1 // pred_region
      _
    $region9: #{tpu_custom_call.1} parent=1 // pred_fallthru
      _
    // Predicated region
    $region10: #{tpu_custom_call.1} parent=1 // pred_check
      _
    $region11: #{tpu_custom_call.1} parent=1 // pred_check_branch
      %15 = sbr.rel (0) target = $region13
    $region12: #{tpu_custom_call.1} parent=1 // pred_region
      _
    $region13: #{tpu_custom_call.1} parent=1 // pred_fallthru
      _
    // Predicated region
    $region14: #{tpu_custom_call.1} parent=1 // pred_check
      _
    $region15: #{tpu_custom_call.1} parent=1 // pred_check_branch
      %17 = sbr.rel (0) target = $region17
    $region16: #{tpu_custom_call.1} parent=1 // pred_region
      _
    $region17: #{tpu_custom_call.1} parent=1 // pred_fallthru
      _
    %v18 = vld [vmem:[%s0] sm:$0xff]
    %v19 = vld [vmem:[%s0 + $0x8] sm:$0xff]
    %v20 = vld [vmem:[%s0 + $0x10] sm:$0xff]
    %v21 = vld [vmem:[%s0 + $0x18] sm:$0xff]
    %v22 = vld [vmem:[%s0 + $0x20] sm:$0xff]
    %v23 = vld [vmem:[%s0 + $0x28] sm:$0xff]
    %v24 = vld [vmem:[%s0 + $0x30] sm:$0xff]
    %v25 = vld [vmem:[%s0 + $0x38] sm:$0xff]
    %v26 = vld [vmem:[%s0 + $0x40] sm:$0xff]
    %v27 = vld [vmem:[%s0 + $0x48] sm:$0xff]
    %v28 = vld [vmem:[%s0 + $0x50] sm:$0xff]
    %v29 = vld [vmem:[%s0 + $0x58] sm:$0xff]
    %v30 = vld [vmem:[%s0 + $0x60] sm:$0xff]
    %v31 = vld [vmem:[%s0 + $0x68] sm:$0xff]
    %v32 = vld [vmem:[%s0 + $0x70] sm:$0xff]
    %v33 = vld [vmem:[%s0 + $0x78] sm:$0xff]
    %v34 = vld [vmem:[%s0 + $0x80] sm:$0xff]
    %v35 = vld [vmem:[%s0 + $0x88] sm:$0xff]
    %v36 = vld [vmem:[%s0 + $0x90] sm:$0xff]
    %v37 = vld [vmem:[%s0 + $0x98] sm:$0xff]
    %v38 = vld [vmem:[%s0 + $0xa0] sm:$0xff]
    %v39 = vld [vmem:[%s0 + $0xa8] sm:$0xff]
    %v40 = vld [vmem:[%s0 + $0xb0] sm:$0xff]
    %v41 = vld [vmem:[%s0 + $0xb8] sm:$0xff]
    %v42 = vld [vmem:[%s0 + $0xc0] sm:$0xff]
    %v43 = vld [vmem:[%s0 + $0xc8] sm:$0xff]
    %v44 = vld [vmem:[%s0 + $0xd0] sm:$0xff]
    %v45 = vld [vmem:[%s0 + $0xd8] sm:$0xff]
    %v46 = vld [vmem:[%s0 + $0xe0] sm:$0xff]
    %v47 = vld [vmem:[%s0 + $0xe8] sm:$0xff]
    %v48 = vld [vmem:[%s0 + $0xf0] sm:$0xff]
    %v49 = vld [vmem:[%s0 + $0xf8] sm:$0xff]
    %v50 = vld [vmem:[%s1] sm:$0xff]
    %v51 = vld [vmem:[%s1 + $0x8] sm:$0xff]
    %v52 = vld [vmem:[%s1 + $0x10] sm:$0xff]
    %v53 = vld [vmem:[%s1 + $0x18] sm:$0xff]
    %v54 = vld [vmem:[%s1 + $0x20] sm:$0xff]
    %v55 = vld [vmem:[%s1 + $0x28] sm:$0xff]
    %v56 = vld [vmem:[%s1 + $0x30] sm:$0xff]
    %v57 = vld [vmem:[%s1 + $0x38] sm:$0xff]
    %v58 = vld [vmem:[%s1 + $0x40] sm:$0xff]
    %v59 = vld [vmem:[%s1 + $0x48] sm:$0xff]
    %v60 = vld [vmem:[%s1 + $0x50] sm:$0xff]
    %v61 = vld [vmem:[%s1 + $0x58] sm:$0xff]
    %v62 = vld [vmem:[%s1 + $0x60] sm:$0xff]
    %v63 = vld [vmem:[%s1 + $0x68] sm:$0xff]
    %v64 = vld [vmem:[%s1 + $0x70] sm:$0xff]
    %v65 = vld [vmem:[%s1 + $0x78] sm:$0xff]
    %v66 = vld [vmem:[%s1 + $0x80] sm:$0xff]
    %v67 = vld [vmem:[%s1 + $0x88] sm:$0xff]
    %v68 = vld [vmem:[%s2] sm:$0x1]
    %v70 = vlaneseq
    %v71 = vshrl.u32 %v70, 7
    %v72 = vsub.s32 0, %v71
    %v73 = vrot.slane %v68, %v72
    %vm75 = vcmask 130048
    %v77 = vsel %vm75, %v19, 0
    %v80 = vsel %vm75, %v21, 0
    %v83 = vsel %vm75, %v23, 0
    %v86 = vsel %vm75, %v25, 0
    %v89 = vsel %vm75, %v27, 0
    %v92 = vsel %vm75, %v29, 0
    %v95 = vsel %vm75, %v31, 0
    %v98 = vsel %vm75, %v33, 0
    %v101 = vsel %vm75, %v35, 0
    %v104 = vsel %vm75, %v37, 0
    %v107 = vsel %vm75, %v39, 0
    %v110 = vsel %vm75, %v41, 0
    %v113 = vsel %vm75, %v43, 0
    %v116 = vsel %vm75, %v45, 0
    %v119 = vsel %vm75, %v47, 0
    %v122 = vsel %vm75, %v49, 0
    %124 = vmatprep.subr.mxu0 0.0
    %125 = vmatpush1.msra.mxu0 %v65
    %126 = vmatprep.subr.mxu0 0.0
    %127 = vmatpush1.msra.mxu0 %v64
    %128 = vmatprep.subr.mxu0 0.0
    %129 = vmatpush1.msra.mxu0 %v63
    %130 = vmatprep.subr.mxu0 0.0
    %131 = vmatpush1.msra.mxu0 %v62
    %132 = vmatprep.subr.mxu0 0.0
    %133 = vmatpush1.msra.mxu0 %v61
    %134 = vmatprep.subr.mxu0 0.0
    %135 = vmatpush1.msra.mxu0 %v60
    %136 = vmatprep.subr.mxu0 0.0
    %137 = vmatpush1.msra.mxu0 %v59
    %138 = vmatprep.subr.mxu0 0.0
    %139 = vmatpush1.msra.mxu0 %v58
    %140 = vmatprep.subr.mxu0 0.0
    %141 = vmatpush1.msra.mxu0 %v57
    %142 = vmatprep.subr.mxu0 0.0
    %143 = vmatpush1.msra.mxu0 %v56
    %144 = vmatprep.subr.mxu0 0.0
    %145 = vmatpush1.msra.mxu0 %v55
    %146 = vmatprep.subr.mxu0 0.0
    %147 = vmatpush1.msra.mxu0 %v54
    %148 = vmatprep.subr.mxu0 0.0
    %149 = vmatpush1.msra.mxu0 %v53
    %150 = vmatprep.subr.mxu0 0.0
    %151 = vmatpush1.msra.mxu0 %v52
    %152 = vmatprep.subr.mxu0 0.0
    %153 = vmatpush1.msra.mxu0 %v51
    %154 = vmatprep.subr.mxu0 0.0
    %155 = vmatpush1.msra.mxu0 %v50
    %156 = vmatprep.subr.mxu0 0.0
    %157 = vmatpush2.msra.mxu0 0.0
    %158 = vmatprep.subr.mxu0 0.0
    %159 = vmatpush2.msra.mxu0 0.0
    %160 = vmatprep.subr.mxu0 0.0
    %161 = vmatpush2.msra.mxu0 0.0
    %162 = vmatprep.subr.mxu0 0.0
    %163 = vmatpush2.msra.mxu0 0.0
    %164 = vmatprep.subr.mxu0 0.0
    %165 = vmatpush2.msra.mxu0 0.0
    %166 = vmatprep.subr.mxu0 0.0
    %167 = vmatpush2.msra.mxu0 0.0
    %168 = vmatprep.subr.mxu0 0.0
    %169 = vmatpush2.msra.mxu0 0.0
    %170 = vmatprep.subr.mxu0 0.0
    %171 = vmatpush2.msra.mxu0 0.0
    %172 = vmatprep.subr.mxu0 0.0
    %173 = vmatpush2.msra.mxu0 0.0
    %174 = vmatprep.subr.mxu0 0.0
    %175 = vmatpush2.msra.mxu0 0.0
    %176 = vmatprep.subr.mxu0 0.0
    %177 = vmatpush2.msra.mxu0 0.0
    %178 = vmatprep.subr.mxu0 0.0
    %179 = vmatpush2.msra.mxu0 0.0
    %180 = vmatprep.subr.mxu0 0.0
    %181 = vmatpush2.msra.mxu0 0.0
    %182 = vmatprep.subr.mxu0 0.0
    %183 = vmatpush2.msra.mxu0 0.0
    %184 = vmatprep.subr.mxu0 0.0
    %185 = vmatpush2.msra.mxu0 %v67
    %186 = vmatprep.subr.mxu0 0.0
    %187 = vmatpush2.msra.mxu0 %v66
    %188 = vmatprep.mubr.f32.mxu0 %v77
    %189 = vmatmul.mubr.f32.gmra.mxu0 %v18
    %v190 = vpop.f32.mrf.mxu0
    %v191 = vadd.f32 %v73, %v190
    %v192 = vpop.f32.mrf.mxu0
    %193 = vmatprep.mubr.f32.mxu0 %v80
    %194 = vmatmul.mubr.f32.gmra.mxu0 %v20
    %v195 = vpop.f32.mrf.mxu0
    %v196 = vadd.f32 %v73, %v195
    %v197 = vpop.f32.mrf.mxu0
    %198 = vmatprep.mubr.f32.mxu0 %v83
    %199 = vmatmul.mubr.f32.gmra.mxu0 %v22
    %v200 = vpop.f32.mrf.mxu0
    %v201 = vadd.f32 %v73, %v200
    %v202 = vpop.f32.mrf.mxu0
    %203 = vmatprep.mubr.f32.mxu0 %v86
    %204 = vmatmul.mubr.f32.gmra.mxu0 %v24
    %v205 = vpop.f32.mrf.mxu0
    %v206 = vadd.f32 %v73, %v205
    %v207 = vpop.f32.mrf.mxu0
    %208 = vmatprep.mubr.f32.mxu0 %v89
    %209 = vmatmul.mubr.f32.gmra.mxu0 %v26
    %v210 = vpop.f32.mrf.mxu0
    %v211 = vadd.f32 %v73, %v210
    %v212 = vpop.f32.mrf.mxu0
    %213 = vmatprep.mubr.f32.mxu0 %v92
    %214 = vmatmul.mubr.f32.gmra.mxu0 %v28
    %v215 = vpop.f32.mrf.mxu0
    %v216 = vadd.f32 %v73, %v215
    %v217 = vpop.f32.mrf.mxu0
    %218 = vmatprep.mubr.f32.mxu0 %v95
    %219 = vmatmul.mubr.f32.gmra.mxu0 %v30
    %v220 = vpop.f32.mrf.mxu0
    %v221 = vadd.f32 %v73, %v220
    %v222 = vpop.f32.mrf.mxu0
    %223 = vmatprep.mubr.f32.mxu0 %v98
    %224 = vmatmul.mubr.f32.gmra.mxu0 %v32
    %v225 = vpop.f32.mrf.mxu0
    %v226 = vadd.f32 %v73, %v225
    %v227 = vpop.f32.mrf.mxu0
    %228 = vmatprep.mubr.f32.mxu0 %v101
    %229 = vmatmul.mubr.f32.gmra.mxu0 %v34
    %v230 = vpop.f32.mrf.mxu0
    %v231 = vadd.f32 %v73, %v230
    %v232 = vpop.f32.mrf.mxu0
    %233 = vmatprep.mubr.f32.mxu0 %v104
    %234 = vmatmul.mubr.f32.gmra.mxu0 %v36
    %v235 = vpop.f32.mrf.mxu0
    %v236 = vadd.f32 %v73, %v235
    %v237 = vpop.f32.mrf.mxu0
    %238 = vmatprep.mubr.f32.mxu0 %v107
    %239 = vmatmul.mubr.f32.gmra.mxu0 %v38
    %v240 = vpop.f32.mrf.mxu0
    %v241 = vadd.f32 %v73, %v240
    %v242 = vpop.f32.mrf.mxu0
    %243 = vmatprep.mubr.f32.mxu0 %v110
    %244 = vmatmul.mubr.f32.gmra.mxu0 %v40
    %v245 = vpop.f32.mrf.mxu0
    %v246 = vadd.f32 %v73, %v245
    %v247 = vpop.f32.mrf.mxu0
    %248 = vmatprep.mubr.f32.mxu0 %v113
    %249 = vmatmul.mubr.f32.gmra.mxu0 %v42
    %v250 = vpop.f32.mrf.mxu0
    %v251 = vadd.f32 %v73, %v250
    %v252 = vpop.f32.mrf.mxu0
    %253 = vmatprep.mubr.f32.mxu0 %v116
    %254 = vmatmul.mubr.f32.gmra.mxu0 %v44
    %v255 = vpop.f32.mrf.mxu0
    %v256 = vadd.f32 %v73, %v255
    %v257 = vpop.f32.mrf.mxu0
    %258 = vmatprep.mubr.f32.mxu0 %v119
    %259 = vmatmul.mubr.f32.gmra.mxu0 %v46
    %v260 = vpop.f32.mrf.mxu0
    %v261 = vadd.f32 %v73, %v260
    %v262 = vpop.f32.mrf.mxu0
    %263 = vmatprep.mubr.f32.mxu0 %v122
    %264 = vmatmul.mubr.f32.gmra.mxu0 %v48
    %v265 = vpop.f32.mrf.mxu0
    %v266 = vadd.f32 %v73, %v265
    %v267 = vpop.f32.mrf.mxu0
    %268 = vdwg.mxu0
    %vm269 = vcmp.gt.f32.partialorder %v191, 0.0
    %vm270 = vcmp.gt.f32.partialorder %v196, 0.0
    %vm271 = vcmp.gt.f32.partialorder %v201, 0.0
    %vm272 = vcmp.gt.f32.partialorder %v206, 0.0
    %vm273 = vcmp.gt.f32.partialorder %v211, 0.0
    %vm274 = vcmp.gt.f32.partialorder %v216, 0.0
    %vm275 = vcmp.gt.f32.partialorder %v221, 0.0
    %vm276 = vcmp.gt.f32.partialorder %v226, 0.0
    %vm277 = vcmp.gt.f32.partialorder %v231, 0.0
    %vm278 = vcmp.gt.f32.partialorder %v236, 0.0
    %vm279 = vcmp.gt.f32.partialorder %v241, 0.0
    %vm280 = vcmp.gt.f32.partialorder %v246, 0.0
    %vm281 = vcmp.gt.f32.partialorder %v251, 0.0
    %vm282 = vcmp.gt.f32.partialorder %v256, 0.0
    %vm283 = vcmp.gt.f32.partialorder %v261, 0.0
    %vm284 = vcmp.gt.f32.partialorder %v266, 0.0
    %v285 = vmin.f32 %v191, 0.0
    %v286 = vmin.f32 %v196, 0.0
    %v287 = vmin.f32 %v201, 0.0
    %v288 = vmin.f32 %v206, 0.0
    %v289 = vmin.f32 %v211, 0.0
    %v290 = vmin.f32 %v216, 0.0
    %v291 = vmin.f32 %v221, 0.0
    %v292 = vmin.f32 %v226, 0.0
    %v293 = vmin.f32 %v231, 0.0
    %v294 = vmin.f32 %v236, 0.0
    %v295 = vmin.f32 %v241, 0.0
    %v296 = vmin.f32 %v246, 0.0
    %v297 = vmin.f32 %v251, 0.0
    %v298 = vmin.f32 %v256, 0.0
    %v299 = vmin.f32 %v261, 0.0
    %v300 = vmin.f32 %v266, 0.0
    %v301 = vmul.f32 %v285, 1.442695
    %v302 = vpow.pop %v301
    %v303 = vmul.f32 %v286, 1.442695
    %v304 = vpow.pop %v303
    %v305 = vmul.f32 %v287, 1.442695
    %v306 = vpow.pop %v305
    %v307 = vmul.f32 %v288, 1.442695
    %v308 = vpow.pop %v307
    %v309 = vmul.f32 %v289, 1.442695
    %v310 = vpow.pop %v309
    %v311 = vmul.f32 %v290, 1.442695
    %v312 = vpow.pop %v311
    %v313 = vmul.f32 %v291, 1.442695
    %v314 = vpow.pop %v313
    %v315 = vmul.f32 %v292, 1.442695
    %v316 = vpow.pop %v315
    %v317 = vmul.f32 %v293, 1.442695
    %v318 = vpow.pop %v317
    %v319 = vmul.f32 %v294, 1.442695
    %v320 = vpow.pop %v319
    %v321 = vmul.f32 %v295, 1.442695
    %v322 = vpow.pop %v321
    %v323 = vmul.f32 %v296, 1.442695
    %v324 = vpow.pop %v323
    %v325 = vmul.f32 %v297, 1.442695
    %v326 = vpow.pop %v325
    %v327 = vmul.f32 %v298, 1.442695
    %v328 = vpow.pop %v327
    %v329 = vmul.f32 %v299, 1.442695
    %v330 = vpow.pop %v329
    %v331 = vmul.f32 %v300, 1.442695
    %v332 = vpow.pop %v331
    %v333 = vsub.f32 %v302, 1.0
    %v334 = vsub.f32 %v304, 1.0
    %v335 = vsub.f32 %v306, 1.0
    %v336 = vsub.f32 %v308, 1.0
    %v337 = vsub.f32 %v310, 1.0
    %v338 = vsub.f32 %v312, 1.0
    %v339 = vsub.f32 %v314, 1.0
    %v340 = vsub.f32 %v316, 1.0
    %v341 = vsub.f32 %v318, 1.0
    %v342 = vsub.f32 %v320, 1.0
    %v343 = vsub.f32 %v322, 1.0
    %v344 = vsub.f32 %v324, 1.0
    %v345 = vsub.f32 %v326, 1.0
    %v346 = vsub.f32 %v328, 1.0
    %v347 = vsub.f32 %v330, 1.0
    %v348 = vsub.f32 %v332, 1.0
    %v349 = vsel %vm269, %v191, %v333
    %v350 = vsel %vm270, %v196, %v334
    %v351 = vsel %vm271, %v201, %v335
    %v352 = vsel %vm272, %v206, %v336
    %v353 = vsel %vm273, %v211, %v337
    %v354 = vsel %vm274, %v216, %v338
    %v355 = vsel %vm275, %v221, %v339
    %v356 = vsel %vm276, %v226, %v340
    %v357 = vsel %vm277, %v231, %v341
    %v358 = vsel %vm278, %v236, %v342
    %v359 = vsel %vm279, %v241, %v343
    %v360 = vsel %vm280, %v246, %v344
    %v361 = vsel %vm281, %v251, %v345
    %v362 = vsel %vm282, %v256, %v346
    %v363 = vsel %vm283, %v261, %v347
    %v364 = vsel %vm284, %v266, %v348
    %v365 = vld [vmem:[%s3] sm:$0xff]
    %v366 = vld [vmem:[%s3 + $0x8] sm:$0xff]
    %v367 = vld [vmem:[%s3 + $0x10] sm:$0xff]
    %v368 = vld [vmem:[%s3 + $0x18] sm:$0xff]
    %vm369 = vcmask 523264
    %v371 = vsel %vm369, %v365, 0
    %v374 = vsel %vm369, %v366, 0
    %v377 = vsel %vm369, %v367, 0
    %v380 = vsel %vm369, %v368, 0
    %382 = vmatprep.subr.mxu0 0.0
    %383 = vmatpush1.msra.mxu0 0.0
    %384 = vmatprep.subr.mxu0 0.0
    %385 = vmatpush1.msra.mxu0 0.0
    %386 = vmatprep.subr.mxu0 0.0
    %387 = vmatpush1.msra.mxu0 0.0
    %388 = vmatprep.subr.mxu0 0.0
    %389 = vmatpush1.msra.mxu0 0.0
    %390 = vmatprep.subr.mxu0 0.0
    %391 = vmatpush1.msra.mxu0 0.0
    %392 = vmatprep.subr.mxu0 0.0
    %393 = vmatpush1.msra.mxu0 0.0
    %394 = vmatprep.subr.mxu0 0.0
    %395 = vmatpush1.msra.mxu0 0.0
    %396 = vmatprep.subr.mxu0 0.0
    %397 = vmatpush1.msra.mxu0 0.0
    %398 = vmatprep.subr.mxu0 0.0
    %399 = vmatpush1.msra.mxu0 %v356
    %400 = vmatprep.subr.mxu0 0.0
    %401 = vmatpush1.msra.mxu0 %v355
    %402 = vmatprep.subr.mxu0 0.0
    %403 = vmatpush1.msra.mxu0 %v354
    %404 = vmatprep.subr.mxu0 0.0
    %405 = vmatpush1.msra.mxu0 %v353
    %406 = vmatprep.subr.mxu0 0.0
    %407 = vmatpush1.msra.mxu0 %v352
    %408 = vmatprep.subr.mxu0 0.0
    %409 = vmatpush1.msra.mxu0 %v351
    %410 = vmatprep.subr.mxu0 0.0
    %411 = vmatpush1.msra.mxu0 %v350
    %412 = vmatprep.subr.mxu0 0.0
    %413 = vmatpush1.msra.mxu0 %v349
    %414 = vmatprep.subr.mxu0 0.0
    %415 = vmatpush2.msra.mxu0 0.0
    %416 = vmatprep.subr.mxu0 0.0
    %417 = vmatpush2.msra.mxu0 0.0
    %418 = vmatprep.subr.mxu0 0.0
    %419 = vmatpush2.msra.mxu0 0.0
    %420 = vmatprep.subr.mxu0 0.0
    %421 = vmatpush2.msra.mxu0 0.0
    %422 = vmatprep.subr.mxu0 0.0
    %423 = vmatpush2.msra.mxu0 0.0
    %424 = vmatprep.subr.mxu0 0.0
    %425 = vmatpush2.msra.mxu0 0.0
    %426 = vmatprep.subr.mxu0 0.0
    %427 = vmatpush2.msra.mxu0 0.0
    %428 = vmatprep.subr.mxu0 0.0
    %429 = vmatpush2.msra.mxu0 0.0
    %430 = vmatprep.subr.mxu0 0.0
    %431 = vmatpush2.msra.mxu0 0.0
    %432 = vmatprep.subr.mxu0 0.0
    %433 = vmatpush2.msra.mxu0 0.0
    %434 = vmatprep.subr.mxu0 0.0
    %435 = vmatpush2.msra.mxu0 0.0
    %436 = vmatprep.subr.mxu0 0.0
    %437 = vmatpush2.msra.mxu0 0.0
    %438 = vmatprep.subr.mxu0 0.0
    %439 = vmatpush2.msra.mxu0 0.0
    %440 = vmatprep.subr.mxu0 0.0
    %441 = vmatpush2.msra.mxu0 0.0
    %442 = vmatprep.subr.mxu0 0.0
    %443 = vmatpush2.msra.mxu0 0.0
    %444 = vmatprep.subr.mxu0 0.0
    %445 = vmatpush2.msra.mxu0 0.0
    %446 = vmatprep.mubr.f32.mxu0 0.0
    %447 = vmatmul.mubr.f32.gmra.mxu0 %v371
    %v448 = vpop.f32.mrf.mxu0
    %v449 = vadd.f32 0.0, %v448
    %v450 = vpop.f32.mrf.mxu0
    %451 = vmatprep.mubr.f32.mxu0 0.0
    %452 = vmatmul.mubr.f32.gmra.mxu0 %v374
    %v453 = vpop.f32.mrf.mxu0
    %v454 = vadd.f32 0.0, %v453
    %v455 = vpop.f32.mrf.mxu0
    %456 = vmatprep.mubr.f32.mxu0 0.0
    %457 = vmatmul.mubr.f32.gmra.mxu0 %v377
    %v458 = vpop.f32.mrf.mxu0
    %v459 = vadd.f32 0.0, %v458
    %v460 = vpop.f32.mrf.mxu0
    %461 = vmatprep.mubr.f32.mxu0 0.0
    %462 = vmatmul.mubr.f32.gmra.mxu0 %v380
    %v463 = vpop.f32.mrf.mxu0
    %v464 = vadd.f32 0.0, %v463
    %v465 = vpop.f32.mrf.mxu0
    %466 = vdwg.mxu0
    %467 = vst [vmem:[#allocation2] sm:$0xff] %v449
    %468 = vst [vmem:[#allocation2 + $0x8] sm:$0xff] %v454
    %469 = vst [vmem:[#allocation2 + $0x10] sm:$0xff] %v459
    %470 = vst [vmem:[#allocation2 + $0x18] sm:$0xff] %v464
    %471 = vmatprep.subr.mxu0 0.0
    %472 = vmatpush1.msra.mxu0 0.0
    %473 = vmatprep.subr.mxu0 0.0
    %474 = vmatpush1.msra.mxu0 0.0
    %475 = vmatprep.subr.mxu0 0.0
    %476 = vmatpush1.msra.mxu0 0.0
    %477 = vmatprep.subr.mxu0 0.0
    %478 = vmatpush1.msra.mxu0 0.0
    %479 = vmatprep.subr.mxu0 0.0
    %480 = vmatpush1.msra.mxu0 0.0
    %481 = vmatprep.subr.mxu0 0.0
    %482 = vmatpush1.msra.mxu0 0.0
    %483 = vmatprep.subr.mxu0 0.0
    %484 = vmatpush1.msra.mxu0 0.0
    %485 = vmatprep.subr.mxu0 0.0
    %486 = vmatpush1.msra.mxu0 0.0
    %487 = vmatprep.subr.mxu0 0.0
    %488 = vmatpush1.msra.mxu0 %v364
    %489 = vmatprep.subr.mxu0 0.0
    %490 = vmatpush1.msra.mxu0 %v363
    %491 = vmatprep.subr.mxu0 0.0
    %492 = vmatpush1.msra.mxu0 %v362
    %493 = vmatprep.subr.mxu0 0.0
    %494 = vmatpush1.msra.mxu0 %v361
    %495 = vmatprep.subr.mxu0 0.0
    %496 = vmatpush1.msra.mxu0 %v360
    %497 = vmatprep.subr.mxu0 0.0
    %498 = vmatpush1.msra.mxu0 %v359
    %499 = vmatprep.subr.mxu0 0.0
    %500 = vmatpush1.msra.mxu0 %v358
    %501 = vmatprep.subr.mxu0 0.0
    %502 = vmatpush1.msra.mxu0 %v357
    %503 = vmatprep.subr.mxu0 0.0
    %504 = vmatpush2.msra.mxu0 0.0
    %505 = vmatprep.subr.mxu0 0.0
    %506 = vmatpush2.msra.mxu0 0.0
    %507 = vmatprep.subr.mxu0 0.0
    %508 = vmatpush2.msra.mxu0 0.0
    %509 = vmatprep.subr.mxu0 0.0
    %510 = vmatpush2.msra.mxu0 0.0
    %511 = vmatprep.subr.mxu0 0.0
    %512 = vmatpush2.msra.mxu0 0.0
    %513 = vmatprep.subr.mxu0 0.0
    %514 = vmatpush2.msra.mxu0 0.0
    %515 = vmatprep.subr.mxu0 0.0
    %516 = vmatpush2.msra.mxu0 0.0
    %517 = vmatprep.subr.mxu0 0.0
    %518 = vmatpush2.msra.mxu0 0.0
    %519 = vmatprep.subr.mxu0 0.0
    %520 = vmatpush2.msra.mxu0 0.0
    %521 = vmatprep.subr.mxu0 0.0
    %522 = vmatpush2.msra.mxu0 0.0
    %523 = vmatprep.subr.mxu0 0.0
    %524 = vmatpush2.msra.mxu0 0.0
    %525 = vmatprep.subr.mxu0 0.0
    %526 = vmatpush2.msra.mxu0 0.0
    %527 = vmatprep.subr.mxu0 0.0
    %528 = vmatpush2.msra.mxu0 0.0
    %529 = vmatprep.subr.mxu0 0.0
    %530 = vmatpush2.msra.mxu0 0.0
    %531 = vmatprep.subr.mxu0 0.0
    %532 = vmatpush2.msra.mxu0 0.0
    %533 = vmatprep.subr.mxu0 0.0
    %534 = vmatpush2.msra.mxu0 0.0
    %535 = vmatprep.mubr.f32.mxu0 0.0
    %536 = vmatmul.mubr.f32.gmra.mxu0 %v371
    %v537 = vpop.f32.mrf.mxu0
    %v538 = vadd.f32 0.0, %v537
    %v539 = vpop.f32.mrf.mxu0
    %540 = vmatprep.mubr.f32.mxu0 0.0
    %541 = vmatmul.mubr.f32.gmra.mxu0 %v374
    %v542 = vpop.f32.mrf.mxu0
    %v543 = vadd.f32 0.0, %v542
    %v544 = vpop.f32.mrf.mxu0
    %545 = vmatprep.mubr.f32.mxu0 0.0
    %546 = vmatmul.mubr.f32.gmra.mxu0 %v377
    %v547 = vpop.f32.mrf.mxu0
    %v548 = vadd.f32 0.0, %v547
    %v549 = vpop.f32.mrf.mxu0
    %550 = vmatprep.mubr.f32.mxu0 0.0
    %551 = vmatmul.mubr.f32.gmra.mxu0 %v380
    %v552 = vpop.f32.mrf.mxu0
    %v553 = vadd.f32 0.0, %v552
    %v554 = vpop.f32.mrf.mxu0
    %555 = vdwg.mxu0
    %s556 = scalar_lea.vmem [#allocation2], 32
    %557 = vst [vmem:[%s556] sm:$0xff] %v538
    %558 = vst [vmem:[%s556 + $0x8] sm:$0xff] %v543
    %559 = vst [vmem:[%s556 + $0x10] sm:$0xff] %v548
    %560 = vst [vmem:[%s556 + $0x18] sm:$0xff] %v553
    // Predicated region
    $region18: #{tpu_custom_call.1} parent=1 // pred_check
      _
    $region19: #{tpu_custom_call.1} parent=1 // pred_check_branch
      %562 = sbr.rel (0) target = $region21
    $region20: #{tpu_custom_call.1} parent=1 // pred_region
      %s564 = ssub.s32 1024, 1024
      %565 = vsyncadd [#allocation3], %s564
      %s566 = sshll.u32 [#allocation2], 4
      %s567 = int_to_ptr.vmem [resolvable:$true] %s566
      %572 = dma.vmem_to_hbm [thread:$0]  %s567, 1024, %s4, [#allocation3], 128, 128, 8
    $region21: #{tpu_custom_call.1} parent=1 // pred_fallthru
      _
    // Predicated region
    $region22: #{tpu_custom_call.1} parent=1 // pred_check
      _
    $region23: #{tpu_custom_call.1} parent=1 // pred_check_branch
      %574 = sbr.rel (0) target = $region25
    $region24: #{tpu_custom_call.1} parent=1 // pred_region
      %575 = dma.done [#allocation3], 1024
    $region25: #{tpu_custom_call.1} parent=1 // pred_fallthru
      _
    %576 = vsyncpa [#allocation3], 1

</llo_original>
